<compile_context>
chip_gen: v6e
topology: v6e:2x2x1
jax: 0.10.0
libtpu: 0.0.40
codegen_flags: <defaults>
</compile_context>

<pallas_src>
import functools

import jax
import jax.numpy as jnp
from jax import lax
from jax.experimental import pallas as pl
from jax.experimental.pallas import tpu as pltpu


# ---------------------------------------------------------------------------
# Chip-aware knobs (guarded query; falls back to safe single-TC defaults)
# ---------------------------------------------------------------------------
def _query_vmem_bytes():
    try:
        v = getattr(pltpu.get_tpu_info(), "vmem_capacity_bytes", None)
        if v:
            return int(v)
    except Exception:
        pass
    return 128 * 1024 * 1024


_VMEM_BYTES = _query_vmem_bytes()
# v7x: 64 MiB VMEM per TensorCore and 2 TCs/chip.  v5e/v6e: 128 MiB, 1 TC.
_SMALL_VMEM = _VMEM_BYTES < 100 * 1024 * 1024
_MULTI_TC = _SMALL_VMEM
_VMEM_LIMIT_BYTES = (48 if _SMALL_VMEM else 64) * 1024 * 1024


# ---------------------------------------------------------------------------
# Fused matmul + bias + (masked) ReLU Pallas kernels (the conv hot path)
# ---------------------------------------------------------------------------
def _mm_bias_act_kernel(x_ref, w_ref, b_ref, lin_ref, o_ref, acc_ref):
    """K-tiled variant: accumulate over the last ('arbitrary') grid axis."""
    k = pl.program_id(2)

    @pl.when(k == 0)
    def _():
        acc_ref[...] = jnp.zeros_like(acc_ref)

    acc_ref[...] += jnp.dot(
        x_ref[...], w_ref[...], preferred_element_type=jnp.float32
    )

    @pl.when(k == pl.num_programs(2) - 1)
    def _():
        y = acc_ref[...] + b_ref[...]
        # lin==0.0 -> relu(y); lin==1.0 -> y (linear column, e.g. commuted pool branch)
        o_ref[...] = jnp.maximum(y, y * lin_ref[...]).astype(o_ref.dtype)


def _mm_bias_act_single_k_kernel(x_ref, w_ref, b_ref, lin_ref, o_ref):
    """Variant used when the whole K dimension fits one block (no scratch needed)."""
    y = jnp.dot(x_ref[...], w_ref[...], preferred_element_type=jnp.float32)
    y = y + b_ref[...]
    o_ref[...] = jnp.maximum(y, y * lin_ref[...]).astype(o_ref.dtype)


def _round_up(x, m):
    return -(-x // m) * m


def _pick_tile_m(m):
    """(tile_m, padded_m): full-extent 16-aligned block when small, else 128-aligned tiles."""
    mp = _round_up(m, 16)
    if mp <= 1024:
        return mp, mp
    best_tm, best_mp = None, None
    for tm in (512, 256, 128):   # prefer bigger tiles; smaller only if strictly less pad
        mpt = _round_up(m, tm)
        if best_mp is None or mpt < best_mp:
            best_tm, best_mp = tm, mpt
    return best_tm, best_mp


def _pick_tile_k(k):
    """(tile_k, padded_k): lane-aligned, exact zero pad, 256-multiple tiles preferred."""
    kp = _round_up(k, 128)
    if kp <= 1024:
        return kp, kp
    if kp % 512 == 0:
        return 512, kp
    if kp % 256 == 0:
        return 256, kp
    return 256, _round_up(kp, 256)


def _pick_tile_n(n, m_blocks):
    """(tile_n, padded_n): always lane-dense (multiple of 128)."""
    np_ = _round_up(n, 128)
    if _MULTI_TC and m_blocks == 1 and np_ >= 256:
        # Dual-TC chip and only one M block: split N so a 'parallel' axis has extent >= 2.
        np256 = _round_up(np_, 256)
        if np256 >= 512:
            return 256, np256
        return 128, np_
    # Single-TC chips (or M already split): big lane-dense tiles, no 128-wide shrink.
    if np_ <= 1024:
        return np_, np_
    np512 = _round_up(np_, 512)
    np256 = _round_up(np_, 256)
    if np512 == np256:
        return 512, np512
    return 256, np256


def fused_matmul_bias_act(x, w, bias, lin_mask=None, out_dtype=jnp.bfloat16):
    """max(y, y*lin) with y = x @ w + bias.  lin=0 -> ReLU column, lin=1 -> linear column.

    x: (M, K), w: (K, N) (bf16, BN scale pre-folded), bias: (N,) f32, lin_mask: (N,) f32.
    """
    m, k = x.shape
    k2, n = w.shape
    assert k == k2

    x = x.astype(jnp.bfloat16)
    w = w.astype(jnp.bfloat16)
    bias = bias.astype(jnp.float32)
    if lin_mask is None:
        lin_mask = jnp.zeros((n,), jnp.float32)      # all columns get ReLU
    lin_mask = lin_mask.astype(jnp.float32)

    tm, mp = _pick_tile_m(m)
    tk, kp = _pick_tile_k(k)
    tn, np_ = _pick_tile_n(n, mp // tm)

    # Dual-TC chip: if both M and N collapsed to one block, split M in two (sublane-aligned)
    # so one grid axis still has extent >= 2.
    if _MULTI_TC and mp // tm == 1 and np_ // tn == 1 and mp >= 256:
        mp = _round_up(m, 32)
        tm = mp // 2

    if mp != m or kp != k:
        x = jnp.pad(x, ((0, mp - m), (0, kp - k)))
    if kp != k or np_ != n:
        w = jnp.pad(w, ((0, kp - k), (0, np_ - n)))
    b2 = (bias if np_ == n else jnp.pad(bias, (0, np_ - n))).reshape(1, np_)
    l2 = (lin_mask if np_ == n else jnp.pad(lin_mask, (0, np_ - n))).reshape(1, np_)

    out_shape = jax.ShapeDtypeStruct((mp, np_), out_dtype)
    kb = kp // tk

    if kb == 1:
        out = pl.pallas_call(
            _mm_bias_act_single_k_kernel,
            out_shape=out_shape,
            grid_spec=pltpu.PrefetchScalarGridSpec(
                num_scalar_prefetch=0,
                grid=(mp // tm, np_ // tn),
                in_specs=[
                    pl.BlockSpec((tm, tk), lambda i, j: (i, 0)),
                    pl.BlockSpec((tk, tn), lambda i, j: (0, j)),
                    pl.BlockSpec((1, tn), lambda i, j: (0, j)),
                    pl.BlockSpec((1, tn), lambda i, j: (0, j)),
                ],
                out_specs=pl.BlockSpec((tm, tn), lambda i, j: (i, j)),
            ),
            compiler_params=pltpu.CompilerParams(
                dimension_semantics=("parallel", "parallel"),
                vmem_limit_bytes=_VMEM_LIMIT_BYTES,
            ),
        )(x, w, b2, l2)
    else:
        out = pl.pallas_call(
            _mm_bias_act_kernel,
            out_shape=out_shape,
            grid_spec=pltpu.PrefetchScalarGridSpec(
                num_scalar_prefetch=0,
                grid=(mp // tm, np_ // tn, kb),
                in_specs=[
                    pl.BlockSpec((tm, tk), lambda i, j, kk: (i, kk)),
                    pl.BlockSpec((tk, tn), lambda i, j, kk: (kk, j)),
                    pl.BlockSpec((1, tn), lambda i, j, kk: (0, j)),
                    pl.BlockSpec((1, tn), lambda i, j, kk: (0, j)),
                ],
                out_specs=pl.BlockSpec((tm, tn), lambda i, j, kk: (i, j)),
                scratch_shapes=[pltpu.VMEM((tm, tn), jnp.float32)],
            ),
            compiler_params=pltpu.CompilerParams(
                dimension_semantics=("parallel", "parallel", "arbitrary"),
                vmem_limit_bytes=_VMEM_LIMIT_BYTES,
            ),
        )(x, w, b2, l2)

    if mp != m or np_ != n:
        out = out[:m, :n]
    return out


# ---------------------------------------------------------------------------
# Conv / pooling glue (patch extraction is plain JAX; matmul is the Pallas kernel)
# ---------------------------------------------------------------------------
def basic_conv2d(x, p):
    """x: (B,H,W,Cin) NHWC bf16.  p: dict(w:(kh,kw,Cin,Cout) bf16 BN-folded, bias:(Cout,) f32)."""
    w = p["w"]
    kh, kw, cin, cout = w.shape
    sh, sw = p["stride"]
    ph, pw = p["pad"]
    B, H, W, _ = x.shape

    if kh == 1 and kw == 1 and sh == 1 and sw == 1 and ph == 0 and pw == 0:
        # 1x1 conv: no im2col, direct (B*H*W, Cin) @ (Cin, Cout) matmul.
        out = fused_matmul_bias_act(
            x.reshape(B * H * W, cin), w.reshape(cin, cout), p["bias"]
        )
        return out.reshape(B, H, W, cout)

    # General kxk conv via im2col.
    # TODO(synk): patches are still materialized in HBM; an in-kernel tap axis with
    #             shifted-window reads would remove this round trip (most convs are 1x1).
    if ph or pw:
        x = jnp.pad(x, ((0, 0), (ph, ph), (pw, pw), (0, 0)))
    Hp, Wp = x.shape[1], x.shape[2]
    ho = (Hp - kh) // sh + 1
    wo = (Wp - kw) // sw + 1
    cols = []
    for di in range(kh):
        for dj in range(kw):
            cols.append(x[:, di:di + sh * ho:sh, dj:dj + sw * wo:sw, :])
    patches = jnp.concatenate(cols, axis=-1).reshape(B * ho * wo, kh * kw * cin)
    out = fused_matmul_bias_act(patches, w.reshape(kh * kw * cin, cout), p["bias"])
    return out.reshape(B, ho, wo, cout)


def fused_1x1_branches(x, branch_params, relu=None):
    """Run several 1x1 BasicConv2d branches sharing the same input as ONE Pallas matmul.

    Per-branch column blocks are padded to multiples of 128 so the output channel slices
    are lane-aligned.  relu[i]=False suppresses the in-kernel bias+ReLU for that branch
    (used for the commuted avg-pool branch, whose bias/ReLU are applied after pooling).
    """
    B, H, W, cin = x.shape
    if relu is None:
        relu = [True] * len(branch_params)
    ws, bs, lins, widths = [], [], [], []
    for q, do_relu in zip(branch_params, relu):
        wq = q["w"].reshape(cin, -1)
        nq = wq.shape[1]
        nq_p = _round_up(nq, 128)
        ws.append(jnp.pad(wq, ((0, 0), (0, nq_p - nq))))
        bq = q["bias"] if do_relu else jnp.zeros_like(q["bias"])
        bs.append(jnp.pad(bq.astype(jnp.float32), (0, nq_p - nq)))
        lins.append(jnp.full((nq_p,), 0.0 if do_relu else 1.0, jnp.float32))
        widths.append((nq, nq_p))
    w_cat = jnp.concatenate(ws, axis=1)
    b_cat = jnp.concatenate(bs, axis=0)
    l_cat = jnp.concatenate(lins, axis=0)

    out = fused_matmul_bias_act(x.reshape(B * H * W, cin), w_cat, b_cat, l_cat)
    out = out.reshape(B, H, W, -1)
    outs, off = [], 0
    for nq, nq_p in widths:           # offsets are multiples of 128 -> lane-aligned slices
        outs.append(out[..., off:off + nq])
        off += nq_p
    return outs


def max_pool_3x3_s2(x):
    return lax.reduce_window(
        x, jnp.array(-jnp.inf, x.dtype), lax.max, (1, 3, 3, 1), (1, 2, 2, 1), "VALID"
    )


def pool_branch_epilogue(z, bias):
    """Commuted avg-pool branch: avg_pool3x3(s1,p1, count_include_pad) of the *linear*
    1x1-conv output, then + folded-BN bias, then ReLU.

    Mathematically identical to torchvision's  BasicConv2d_1x1(avg_pool(x))  because the
    1x1 conv (per-pixel linear map) commutes with the spatial average; the pool now runs
    on the small branch output instead of the wide block input."""
    s = lax.reduce_window(
        z.astype(jnp.float32), 0.0, lax.add, (1, 3, 3, 1), (1, 1, 1, 1),
        [(0, 0), (1, 1), (1, 1), (0, 0)],
    )
    y = s * (1.0 / 9.0) + bias.astype(jnp.float32)
    return jnp.maximum(y, 0.0).astype(jnp.bfloat16)


# ---------------------------------------------------------------------------
# Deterministic parameter init (synthetic weights; BN folded into weight/bias, eval mode)
# ---------------------------------------------------------------------------
class _KeyGen:
    def __init__(self, key):
        self._key = key

    def __call__(self):
        self._key, sub = jax.random.split(self._key)
        return sub


def _init_basic_conv(kg, cin, cout, ksize, stride=(1, 1), pad=(0, 0)):
    kh, kw = (ksize, ksize) if isinstance(ksize, int) else ksize
    fan_in = cin * kh * kw
    w = jax.random.normal(kg(), (kh, kw, cin, cout), jnp.float32) * jnp.sqrt(
        2.0 / fan_in
    )
    # BatchNorm2d(eps=1e-3) eval-mode fold: gamma=1, beta=0, running_mean=0, running_var=1
    eps = 1e-3
    gamma = jnp.ones((cout,), jnp.float32)
    beta = jnp.zeros((cout,), jnp.float32)
    r_mean = jnp.zeros((cout,), jnp.float32)
    r_var = jnp.ones((cout,), jnp.float32)
    scale = gamma / jnp.sqrt(r_var + eps)
    bias = beta - r_mean * scale
    w_folded = (w * scale).astype(jnp.bfloat16)  # fold BN scale; bf16 MXU operand
    return {"w": w_folded, "bias": bias, "stride": stride, "pad": pad}


def init_inception_v3_params(key):
    kg = _KeyGen(key)
    bc = functools.partial(_init_basic_conv, kg)
    P = {}
    # stem
    P["Conv2d_1a_3x3"] = bc(3, 32, 3, stride=(2, 2))
    P["Conv2d_2a_3x3"] = bc(32, 32, 3)
    P["Conv2d_2b_3x3"] = bc(32, 64, 3, pad=(1, 1))
    P["Conv2d_3b_1x1"] = bc(64, 80, 1)
    P["Conv2d_4a_3x3"] = bc(80, 192, 3)

    def inception_a(cin, pool_feat):
        return {
            "b1x1": bc(cin, 64, 1),
            "b5x5_1": bc(cin, 48, 1),
            "b5x5_2": bc(48, 64, 5, pad=(2, 2)),
            "b3x3dbl_1": bc(cin, 64, 1),
            "b3x3dbl_2": bc(64, 96, 3, pad=(1, 1)),
            "b3x3dbl_3": bc(96, 96, 3, pad=(1, 1)),
            "bpool": bc(cin, pool_feat, 1),
        }

    def inception_c(cin, c7):
        return {
            "b1x1": bc(cin, 192, 1),
            "b7x7_1": bc(cin, c7, 1),
            "b7x7_2": bc(c7, c7, (1, 7), pad=(0, 3)),
            "b7x7_3": bc(c7, 192, (7, 1), pad=(3, 0)),
            "b7x7dbl_1": bc(cin, c7, 1),
            "b7x7dbl_2": bc(c7, c7, (7, 1), pad=(3, 0)),
            "b7x7dbl_3": bc(c7, c7, (1, 7), pad=(0, 3)),
            "b7x7dbl_4": bc(c7, c7, (7, 1), pad=(3, 0)),
            "b7x7dbl_5": bc(c7, 192, (1, 7), pad=(0, 3)),
            "bpool": bc(cin, 192, 1),
        }

    def inception_e(cin):
        return {
            "b1x1": bc(cin, 320, 1),
            "b3x3_1": bc(cin, 384, 1),
            "b3x3_2a": bc(384, 384, (1, 3), pad=(0, 1)),
            "b3x3_2b": bc(384, 384, (3, 1), pad=(1, 0)),
            "b3x3dbl_1": bc(cin, 448, 1),
            "b3x3dbl_2": bc(448, 384, 3, pad=(1, 1)),
            "b3x3dbl_3a": bc(384, 384, (1, 3), pad=(0, 1)),
            "b3x3dbl_3b": bc(384, 384, (3, 1), pad=(1, 0)),
            "bpool": bc(cin, 192, 1),
        }

    P["Mixed_5b"] = inception_a(192, 32)   # -> 256
    P["Mixed_5c"] = inception_a(256, 64)   # -> 288
    P["Mixed_5d"] = inception_a(288, 64)   # -> 288
    P["Mixed_6a"] = {                       # -> 768
        "b3x3": bc(288, 384, 3, stride=(2, 2)),
        "b3x3dbl_1": bc(288, 64, 1),
        "b3x3dbl_2": bc(64, 96, 3, pad=(1, 1)),
        "b3x3dbl_3": bc(96, 96, 3, stride=(2, 2)),
    }
    P["Mixed_6b"] = inception_c(768, 128)
    P["Mixed_6c"] = inception_c(768, 160)
    P["Mixed_6d"] = inception_c(768, 160)
    P["Mixed_6e"] = inception_c(768, 192)
    P["Mixed_7a"] = {                       # -> 1280
        "b3x3_1": bc(768, 192, 1),
        "b3x3_2": bc(192, 320, 3, stride=(2, 2)),
        "b7x7x3_1": bc(768, 192, 1),
        "b7x7x3_2": bc(192, 192, (1, 7), pad=(0, 3)),
        "b7x7x3_3": bc(192, 192, (7, 1), pad=(3, 0)),
        "b7x7x3_4": bc(192, 192, 3, stride=(2, 2)),
    }
    P["Mixed_7b"] = inception_e(1280)       # -> 2048
    P["Mixed_7c"] = inception_e(2048)       # -> 2048
    return P


# ---------------------------------------------------------------------------
# Inception block forwards (branch/concat ordering matches torchvision exactly)
# ---------------------------------------------------------------------------
def _inception_a(x, p):
    b1, b5, b3, zbp = fused_1x1_branches(
        x, [p["b1x1"], p["b5x5_1"], p["b3x3dbl_1"], p["bpool"]],
        relu=[True, True, True, False])
    b5 = basic_conv2d(b5, p["b5x5_2"])
    b3 = basic_conv2d(basic_conv2d(b3, p["b3x3dbl_2"]), p["b3x3dbl_3"])
    bp = pool_branch_epilogue(zbp, p["bpool"]["bias"])
    return jnp.concatenate([b1, b5, b3, bp], axis=-1)


def _inception_b(x, p):  # Mixed_6a
    b3 = basic_conv2d(x, p["b3x3"])
    bd = basic_conv2d(
        basic_conv2d(basic_conv2d(x, p["b3x3dbl_1"]), p["b3x3dbl_2"]), p["b3x3dbl_3"]
    )
    bp = max_pool_3x3_s2(x)
    return jnp.concatenate([b3, bd, bp], axis=-1)


def _inception_c(x, p):
    b1, b7, bd, zbp = fused_1x1_branches(
        x, [p["b1x1"], p["b7x7_1"], p["b7x7dbl_1"], p["bpool"]],
        relu=[True, True, True, False])
    b7 = basic_conv2d(basic_conv2d(b7, p["b7x7_2"]), p["b7x7_3"])
    for name in ["b7x7dbl_2", "b7x7dbl_3", "b7x7dbl_4", "b7x7dbl_5"]:
        bd = basic_conv2d(bd, p[name])
    bp = pool_branch_epilogue(zbp, p["bpool"]["bias"])
    return jnp.concatenate([b1, b7, bd, bp], axis=-1)


def _inception_d(x, p):  # Mixed_7a
    b3, b7 = fused_1x1_branches(x, [p["b3x3_1"], p["b7x7x3_1"]])
    b3 = basic_conv2d(b3, p["b3x3_2"])
    for name in ["b7x7x3_2", "b7x7x3_3", "b7x7x3_4"]:
        b7 = basic_conv2d(b7, p[name])
    bp = max_pool_3x3_s2(x)
    return jnp.concatenate([b3, b7, bp], axis=-1)


def _inception_e(x, p):
    b1, b3, bd, zbp = fused_1x1_branches(
        x, [p["b1x1"], p["b3x3_1"], p["b3x3dbl_1"], p["bpool"]],
        relu=[True, True, True, False])
    b3 = jnp.concatenate(
        [basic_conv2d(b3, p["b3x3_2a"]), basic_conv2d(b3, p["b3x3_2b"])], axis=-1
    )
    bd = basic_conv2d(bd, p["b3x3dbl_2"])
    bd = jnp.concatenate(
        [basic_conv2d(bd, p["b3x3dbl_3a"]), basic_conv2d(bd, p["b3x3dbl_3b"])], axis=-1
    )
    bp = pool_branch_epilogue(zbp, p["bpool"]["bias"])
    return jnp.concatenate([b1, b3, bd, bp], axis=-1)


def _transform_input(x_nchw):
    # torchvision inception_v3 sets transform_input=True when pretrained weights are used
    # (the module's default is pretrained=True), so we match that path.
    x0 = jnp.expand_dims(x_nchw[:, 0], 1) * (0.229 / 0.5) + (0.485 - 0.5) / 0.5
    x1 = jnp.expand_dims(x_nchw[:, 1], 1) * (0.224 / 0.5) + (0.456 - 0.5) / 0.5
    x2 = jnp.expand_dims(x_nchw[:, 2], 1) * (0.225 / 0.5) + (0.406 - 0.5) / 0.5
    return jnp.concatenate([x0, x1, x2], axis=1)


def inception_backbone_forward(params, x_nchw):
    """x_nchw: (B, 3, H, W) float32, H,W >= 75.  Returns features (B, 2048) float32."""
    x = _transform_input(x_nchw)
    x = jnp.transpose(x, (0, 2, 3, 1)).astype(jnp.bfloat16)  # NCHW -> NHWC, bf16 activations
    x = basic_conv2d(x, params["Conv2d_1a_3x3"])
    x = basic_conv2d(x, params["Conv2d_2a_3x3"])
    x = basic_conv2d(x, params["Conv2d_2b_3x3"])
    x = max_pool_3x3_s2(x)
    x = basic_conv2d(x, params["Conv2d_3b_1x1"])
    x = basic_conv2d(x, params["Conv2d_4a_3x3"])
    x = max_pool_3x3_s2(x)
    x = _inception_a(x, params["Mixed_5b"])
    x = _inception_a(x, params["Mixed_5c"])
    x = _inception_a(x, params["Mixed_5d"])
    x = _inception_b(x, params["Mixed_6a"])
    x = _inception_c(x, params["Mixed_6b"])
    x = _inception_c(x, params["Mixed_6c"])
    x = _inception_c(x, params["Mixed_6d"])
    x = _inception_c(x, params["Mixed_6e"])
    x = _inception_d(x, params["Mixed_7a"])
    x = _inception_e(x, params["Mixed_7b"])
    x = _inception_e(x, params["Mixed_7c"])
    # adaptive avgpool -> (B, 2048); a dedicated kernel would be pure launch overhead here
    feats = x.astype(jnp.float32).mean(axis=(1, 2))
    # dropout: identity at inference; fc = nn.Identity()
    return feats


if __name__ == "__main__":
    key = jax.random.PRNGKey(0)
    k_param, k_data = jax.random.split(key)
    params = init_inception_v3_params(k_param)
    # 75x75 is the minimum spatial size Inception-v3 accepts (spatial reaches 1x1 at Mixed_7a)
    x = jax.random.normal(k_data, (2, 3, 75, 75), jnp.float32)
    feats = inception_backbone_forward(params, x)
    feats = jax.block_until_ready(feats)
    assert feats.shape == (2, 2048), feats.shape
    assert bool(jnp.all(jnp.isfinite(feats)))
    print("KERNEL_OK")
</pallas_src>

<mosaic_0001>
module attributes {stable_mosaic.version = 11 : i64} {
  func.func @_mm_bias_act_single_k_kernel(%arg0: i32, %arg1: i32, %arg2: memref<256x128xbf16, #tpu.memory_space<vmem>>, %arg3: memref<128x128xbf16, #tpu.memory_space<vmem>>, %arg4: memref<1x128xf32, #tpu.memory_space<vmem>>, %arg5: memref<1x128xf32, #tpu.memory_space<vmem>>, %arg6: memref<256x128xbf16, #tpu.memory_space<vmem>>) attributes {dimension_semantics = [#tpu.dimension_semantics<parallel>, #tpu.dimension_semantics<parallel>], iteration_bounds = array<i64: 11, 1>, scalar_prefetch = 0 : i64, scratch_operands = 0 : i64, tpu.core_type = #tpu.core_type<tc>, window_params = [{transform_indices = @transform_0, window_bounds = array<i64: 256, 128>}, {transform_indices = @transform_1, window_bounds = array<i64: 128, 128>}, {transform_indices = @transform_2, window_bounds = array<i64: 1, 128>}, {transform_indices = @transform_3, window_bounds = array<i64: 1, 128>}, {transform_indices = @transform_4, window_bounds = array<i64: 256, 128>}]} {
    %c0 = arith.constant 0 : index
    %c0_0 = arith.constant 0 : index
    %0 = vector.load %arg2[%c0, %c0_0] : memref<256x128xbf16, #tpu.memory_space<vmem>>, vector<256x128xbf16>
    %c0_1 = arith.constant 0 : index
    %c0_2 = arith.constant 0 : index
    %1 = vector.load %arg3[%c0_1, %c0_2] : memref<128x128xbf16, #tpu.memory_space<vmem>>, vector<128x128xbf16>
    %cst = arith.constant dense<0.000000e+00> : vector<256x128xf32>
    %2 = tpu.matmul %0, %1, %cst {dimension_numbers = #tpu.dot_dimension_numbers<[1], [0], [0], [1], [0, 0, 1, 1], [], []>} : vector<256x128xbf16>, vector<128x128xbf16>, vector<256x128xf32> -> vector<256x128xf32>
    %c0_3 = arith.constant 0 : index
    %c0_4 = arith.constant 0 : index
    %3 = vector.load %arg4[%c0_3, %c0_4] : memref<1x128xf32, #tpu.memory_space<vmem>>, vector<1x128xf32>
    %4 = vector.broadcast %3 : vector<1x128xf32> to vector<256x128xf32>
    %5 = arith.addf %2, %4 : vector<256x128xf32>
    %c0_5 = arith.constant 0 : index
    %c0_6 = arith.constant 0 : index
    %6 = vector.load %arg5[%c0_5, %c0_6] : memref<1x128xf32, #tpu.memory_space<vmem>>, vector<1x128xf32>
    %7 = vector.broadcast %6 : vector<1x128xf32> to vector<256x128xf32>
    %8 = arith.mulf %5, %7 : vector<256x128xf32>
    %9 = arith.maximumf %5, %8 : vector<256x128xf32>
    %10 = arith.truncf %9 : vector<256x128xf32> to vector<256x128xbf16>
    %c0_7 = arith.constant 0 : index
    %c0_8 = arith.constant 0 : index
    %11 = vector.load %arg6[%c0_7, %c0_8] : memref<256x128xbf16, #tpu.memory_space<vmem>>, vector<256x128xbf16>
    tpu.vector_store %arg6[%c0_7, %c0_8], %10 {strides = array<i32>} : memref<256x128xbf16, #tpu.memory_space<vmem>>, vector<256x128xbf16>,
    return
  }
  func.func @transform_0(%arg0: i32, %arg1: i32) -> (i32, i32) {
    %c0_i32 = arith.constant 0 : i32
    %c0_i32_0 = arith.constant 0 : i32
    return %arg0, %c0_i32 : i32, i32
  }
  func.func @transform_1(%arg0: i32, %arg1: i32) -> (i32, i32) {
    %c0_i32 = arith.constant 0 : i32
    %c0_i32_0 = arith.constant 0 : i32
    return %c0_i32, %arg1 : i32, i32
  }
  func.func @transform_2(%arg0: i32, %arg1: i32) -> (i32, i32) {
    %c0_i32 = arith.constant 0 : i32
    %c0_i32_0 = arith.constant 0 : i32
    return %c0_i32, %arg1 : i32, i32
  }
  func.func @transform_3(%arg0: i32, %arg1: i32) -> (i32, i32) {
    %c0_i32 = arith.constant 0 : i32
    %c0_i32_0 = arith.constant 0 : i32
    return %c0_i32, %arg1 : i32, i32
  }
  func.func @transform_4(%arg0: i32, %arg1: i32) -> (i32, i32) {
    %c0_i32 = arith.constant 0 : i32
    return %arg0, %arg1 : i32, i32
  }
}

</mosaic_0001>

<llo_original>
// kernel: tpu_custom_call.1
$region0: #{tpu_custom_call.1}
  #allocation0 [shape = 'u32[]', space=smem, size = 0x4, offset = 0x4, fixed_abs, tag = 'smem constant byte address 0x4 - core index']
  #allocation1 [shape = 'u32[144,128]{1,0:T(1,128)}', space=vmem, size = 0x12000, scoped, tag = 'internal scratch']
  %s0 = inlined_call_operand.hbm [shape: bf16[2816,128], index: 0, kind: input, shape index: {}]
  %s1 = inlined_call_operand.hbm [shape: bf16[128,128], index: 1, kind: input, shape index: {}]
  %s2 = inlined_call_operand.vmem [shape: f32[1,128], index: 2, kind: input, shape index: {}]
  %s3 = inlined_call_operand.vmem [shape: f32[1,128], index: 3, kind: input, shape index: {}]
  %s4 = inlined_call_operand.hbm [shape: bf16[2816,128], index: 4, kind: output, shape index: {}]
  %s5 = sld [smem:[#allocation0]]
  $region57: #{tpu_custom_call.1} parent=0
    _
  %s7 = ssub.s32 1, %s5
  %s8 = scalar_select 0, %s7, %s5
  $region1: #{tpu_custom_call.1} parent=0
    #allocation2 [shape = 'u8[131072]{0}', space=vmem, size = 0x20000, scoped, tag = 'input window, operand 0']
    #allocation3 [shape = 's32[2]{0}', space=sflag, size = 0x8, scoped, tag = 'scoped memory for tpu_custom_call.1']
    #allocation4 [shape = 's32[2]{0}', space=sflag, size = 0x8, scoped, tag = 'scoped memory for tpu_custom_call.1']
    #allocation5 [shape = 'u8[32768]{0}', space=vmem, size = 0x8000, scoped, tag = 'input window, operand 1, single buffered']
    #allocation6 [shape = 's32[1]{0}', space=sflag, size = 0x4, scoped, tag = 'scoped memory for tpu_custom_call.1']
    #allocation7 [shape = 'u8[131072]{0}', space=vmem, size = 0x20000, scoped, tag = 'output window, operand 0']
    %9 = vsyncpa [#allocation3], 0
    %s10 = scalar_lea.sflag [#allocation3], 1
    %11 = vsyncpa %s10, 0
    %12 = vsyncpa [#allocation6], 0
    %13 = vsyncpa [#allocation4], 0
    %s14 = scalar_lea.sflag [#allocation4], 1
    %15 = vsyncpa %s14, 0
    loop: start=0, step=1, limit=13
    $region2: #{tpu_custom_call.1} parent=1 // loop_pre_header
      _
    $region3: #{tpu_custom_call.1} parent=1 // loop_header
      %s17 = sphi 0, %s21
      %p18 = scmp.ge.s32.totalorder %s17, 13
      %s24 = sphi 0, %s36
      %s25 = sphi 0, %s32
      %s26 = sphi 0, %s24
      %s27 = sphi 0, %s25
      %s28 = sphi 0, %s26
      %s29 = sphi 0, %s27
      %s39 = sphi 0, %s41
      %s42 = sphi 0, %s39
      %s43 = sphi 0, %s42
      %s59 = sphi 0, %s43
      %s65 = sphi 0, %s67
      %s68 = sphi 0, %s65
      %s69 = sphi 0, %s68
      %s85 = sphi 0, %s69
      %s91 = sphi 0, %s93
      %s94 = sphi 0, %s91
      %s95 = sphi 0, %s94
      %s111 = sphi 0, %s95
      %s117 = sphi 0, %s119
      %s120 = sphi 0, %s117
      %s121 = sphi 0, %s120
      %s137 = sphi 0, %s121
      %s145 = sphi 0, %s147
      %s148 = sphi 0, %s145
      %s149 = sphi 0, %s148
      %s165 = sphi 0, %s149
    $region4: #{tpu_custom_call.1} parent=1 // loop_header_branch
      %20 = sbr.rel (%p18) target = $region8
    $region5: #{tpu_custom_call.1} parent=1 // loop_body
      %s22 = ssub.s32 %s17, 1
      %s23 = ssub.s32 %s17, 2
      %s30 = sadd.s32 1, %s25
      %p31 = scmp.ge.s32.totalorder %s30, 1
      %s32 = scalar_select %p31, 0, %s30
      %s33 = sadd.s32 1, %s24
      %s34 = scalar_select %p31, %s33, %s24
      %p35 = scmp.ge.s32.totalorder %s34, 11
      %s36 = scalar_select %p35, 0, %s34
      %s37 = ssub.s32 %s24, %s36
      %p38 = scmp.eq.s32.totalorder %s37, 0
      %s40 = sadd.s32 %s39, 1
      %s41 = scalar_select %p38, %s39, %s40
      %p44 = pneg %p38
      %p45 = scmp.eq.s32.totalorder %s17, 10
      %p46 = por %p44, %p45
      %p47 = scmp.ne.s32.totalorder %s39, %s42
      %p48 = scmp.eq.s32.totalorder %s17, 0
      %p49 = por %p47, %p48
      %p50 = scmp.ne.s32.totalorder %s39, %s42
      %p51 = scmp.eq.s32.totalorder %s22, 10
      %p52 = por %p50, %p51
      %p53 = scmp.ne.s32.totalorder %s42, %s43
      %p54 = scmp.eq.s32.totalorder %s22, 0
      %p55 = por %p53, %p54
      %p56 = scmp.ne.s32.totalorder %s42, %s43
      %p57 = scmp.eq.s32.totalorder %s23, 10
      %p58 = por %p56, %p57
      %p60 = scmp.ne.s32.totalorder %s43, %s59
      %p61 = scmp.eq.s32.totalorder %s23, 0
      %p62 = por %p60, %p61
      %s63 = ssub.s32 %s25, %s32
      %p64 = scmp.eq.s32.totalorder %s63, 0
      %s66 = sadd.s32 %s65, 1
      %s67 = scalar_select %p64, %s65, %s66
      %p70 = pneg %p64
      %p71 = scmp.eq.s32.totalorder %s17, 10
      %p72 = por %p70, %p71
      %p73 = scmp.ne.s32.totalorder %s65, %s68
      %p74 = scmp.eq.s32.totalorder %s17, 0
      %p75 = por %p73, %p74
      %p76 = scmp.ne.s32.totalorder %s65, %s68
      %p77 = scmp.eq.s32.totalorder %s22, 10
      %p78 = por %p76, %p77
      %p79 = scmp.ne.s32.totalorder %s68, %s69
      %p80 = scmp.eq.s32.totalorder %s22, 0
      %p81 = por %p79, %p80
      %p82 = scmp.ne.s32.totalorder %s68, %s69
      %p83 = scmp.eq.s32.totalorder %s23, 10
      %p84 = por %p82, %p83
      %p86 = scmp.ne.s32.totalorder %s69, %s85
      %p87 = scmp.eq.s32.totalorder %s23, 0
      %p88 = por %p86, %p87
      %s89 = ssub.s32 %s25, %s32
      %p90 = scmp.eq.s32.totalorder %s89, 0
      %s92 = sadd.s32 %s91, 1
      %s93 = scalar_select %p90, %s91, %s92
      %p96 = pneg %p90
      %p97 = scmp.eq.s32.totalorder %s17, 10
      %p98 = por %p96, %p97
      %p99 = scmp.ne.s32.totalorder %s91, %s94
      %p100 = scmp.eq.s32.totalorder %s17, 0
      %p101 = por %p99, %p100
      %p102 = scmp.ne.s32.totalorder %s91, %s94
      %p103 = scmp.eq.s32.totalorder %s22, 10
      %p104 = por %p102, %p103
      %p105 = scmp.ne.s32.totalorder %s94, %s95
      %p106 = scmp.eq.s32.totalorder %s22, 0
      %p107 = por %p105, %p106
      %p108 = scmp.ne.s32.totalorder %s94, %s95
      %p109 = scmp.eq.s32.totalorder %s23, 10
      %p110 = por %p108, %p109
      %p112 = scmp.ne.s32.totalorder %s95, %s111
      %p113 = scmp.eq.s32.totalorder %s23, 0
      %p114 = por %p112, %p113
      %s115 = ssub.s32 %s25, %s32
      %p116 = scmp.eq.s32.totalorder %s115, 0
      %s118 = sadd.s32 %s117, 1
      %s119 = scalar_select %p116, %s117, %s118
      %p122 = pneg %p116
      %p123 = scmp.eq.s32.totalorder %s17, 10
      %p124 = por %p122, %p123
      %p125 = scmp.ne.s32.totalorder %s117, %s120
      %p126 = scmp.eq.s32.totalorder %s17, 0
      %p127 = por %p125, %p126
      %p128 = scmp.ne.s32.totalorder %s117, %s120
      %p129 = scmp.eq.s32.totalorder %s22, 10
      %p130 = por %p128, %p129
      %p131 = scmp.ne.s32.totalorder %s120, %s121
      %p132 = scmp.eq.s32.totalorder %s22, 0
      %p133 = por %p131, %p132
      %p134 = scmp.ne.s32.totalorder %s120, %s121
      %p135 = scmp.eq.s32.totalorder %s23, 10
      %p136 = por %p134, %p135
      %p138 = scmp.ne.s32.totalorder %s121, %s137
      %p139 = scmp.eq.s32.totalorder %s23, 0
      %p140 = por %p138, %p139
      %s141 = ssub.s32 %s24, %s36
      %s142 = ssub.s32 %s25, %s32
      %s143 = sor.u32 %s141, %s142
      %p144 = scmp.eq.s32.totalorder %s143, 0
      %s146 = sadd.s32 %s145, 1
      %s147 = scalar_select %p144, %s145, %s146
      %p150 = pneg %p144
      %p151 = scmp.eq.s32.totalorder %s17, 10
      %p152 = por %p150, %p151
      %p153 = scmp.ne.s32.totalorder %s145, %s148
      %p154 = scmp.eq.s32.totalorder %s17, 0
      %p155 = por %p153, %p154
      %p156 = scmp.ne.s32.totalorder %s145, %s148
      %p157 = scmp.eq.s32.totalorder %s22, 10
      %p158 = por %p156, %p157
      %p159 = scmp.ne.s32.totalorder %s148, %s149
      %p160 = scmp.eq.s32.totalorder %s22, 0
      %p161 = por %p159, %p160
      %p162 = scmp.ne.s32.totalorder %s148, %s149
      %p163 = scmp.eq.s32.totalorder %s23, 10
      %p164 = por %p162, %p163
      %p166 = scmp.ne.s32.totalorder %s149, %s165
      %p167 = scmp.eq.s32.totalorder %s23, 0
      %p168 = por %p166, %p167
      %p169 = scmp.le.s32.totalorder 1, %s17
      %p170 = scmp.lt.s32.totalorder %s17, 12
      %p171 = pnand %p169, %p170
      %p172 = pneg %p171
      // Predicated region
      $region9: #{tpu_custom_call.1} parent=5 // pred_check
        _
      $region10: #{tpu_custom_call.1} parent=5 // pred_check_branch
        %174 = sbr.rel (%p171) target = $region12
      $region11: #{tpu_custom_call.1} parent=5 // pred_region
        %s175 = ssub.s32 %s17, 1
        // Predicated region
        $region13: #{tpu_custom_call.1} parent=11 // pred_check
          %p176 = pneg %p81
        $region14: #{tpu_custom_call.1} parent=11 // pred_check_branch
          %178 = sbr.rel (%p176) target = $region16
        $region15: #{tpu_custom_call.1} parent=11 // pred_region
          %s180 = ssub.s32 1024, 1024
          %181 = vsyncadd [#allocation6], %s180
          %s182 = smul.addr %s27, 64
          %s183 = scalar_lea.hbm %s1, %s182
          %s184 = sshll.u32 [#allocation5], 4
          %s185 = int_to_ptr.vmem [resolvable:$true] %s184
          %190 = dma.hbm_to_vmem [thread:$0]  %s183, 1024, %s185, [#allocation6], 64, 64, 4
        $region16: #{tpu_custom_call.1} parent=11 // pred_fallthru
          _
        // Predicated region
        $region17: #{tpu_custom_call.1} parent=11 // pred_check
          %p191 = pneg %p107
        $region18: #{tpu_custom_call.1} parent=11 // pred_check_branch
          %193 = sbr.rel (%p191) target = $region20
        $region19: #{tpu_custom_call.1} parent=11 // pred_region
          %p194 = scmp.lt.s32.totalorder %s27, 0
          %s195 = scalar_select %p194, %s27, 0
          %s196 = scalar_lea.vmem %s2, %s195
        $region20: #{tpu_custom_call.1} parent=11 // pred_fallthru
          _
        // Predicated region
        $region21: #{tpu_custom_call.1} parent=11 // pred_check
          %p197 = pneg %p133
        $region22: #{tpu_custom_call.1} parent=11 // pred_check_branch
          %199 = sbr.rel (%p197) target = $region24
        $region23: #{tpu_custom_call.1} parent=11 // pred_region
          %p200 = scmp.lt.s32.totalorder %s27, 0
          %s201 = scalar_select %p200, %s27, 0
          %s202 = scalar_lea.vmem %s3, %s201
        $region24: #{tpu_custom_call.1} parent=11 // pred_fallthru
          _
      $region12: #{tpu_custom_call.1} parent=5 // pred_fallthru
        _
      %p203 = scmp.lt.s32.totalorder %s17, 11
      // Predicated region
      $region25: #{tpu_custom_call.1} parent=5 // pred_check
        %p204 = pneg %p203
      $region26: #{tpu_custom_call.1} parent=5 // pred_check_branch
        %206 = sbr.rel (%p204) target = $region28
      $region27: #{tpu_custom_call.1} parent=5 // pred_region
        // Predicated region
        $region29: #{tpu_custom_call.1} parent=27 // pred_check
          %p207 = pneg %p49
        $region30: #{tpu_custom_call.1} parent=27 // pred_check_branch
          %209 = sbr.rel (%p207) target = $region32
        $region31: #{tpu_custom_call.1} parent=27 // pred_region
          %s210 = sand.u32 %s39, 1
          %s211 = scalar_lea.sflag [#allocation3], %s210
          %s212 = sand.u32 %s39, 1
          %s213 = smul.addr %s212, 128
          %s214 = scalar_lea.vmem [#allocation2], %s213
          %s215 = smul.u32 32, %s24
          %s217 = ssub.s32 2048, 2048
          %218 = vsyncadd %s211, %s217
          %s219 = smul.addr %s215, 64
          %s220 = scalar_lea.hbm %s0, %s219
          %s221 = sshll.u32 %s214, 4
          %s222 = int_to_ptr.vmem [resolvable:$true] %s221
          %227 = dma.hbm_to_vmem [thread:$0]  %s220, 2048, %s222, %s211, 64, 64, 4
        $region32: #{tpu_custom_call.1} parent=27 // pred_fallthru
          _
      $region28: #{tpu_custom_call.1} parent=5 // pred_fallthru
        _
      %p228 = scmp.le.s32.totalorder 1, %s17
      %p229 = scmp.lt.s32.totalorder %s17, 12
      %p230 = pnand %p228, %p229
      %p231 = pneg %p230
      // Predicated region
      $region33: #{tpu_custom_call.1} parent=5 // pred_check
        _
      $region34: #{tpu_custom_call.1} parent=5 // pred_check_branch
        %233 = sbr.rel (%p230) target = $region36
      $region35: #{tpu_custom_call.1} parent=5 // pred_region
        %s234 = ssub.s32 %s17, 1
        %s235 = sand.u32 %s42, 1
        %s236 = scalar_lea.sflag [#allocation3], %s235
        %s237 = sand.u32 %s42, 1
        %s238 = smul.addr %s237, 128
        %s239 = scalar_lea.vmem [#allocation2], %s238
        // Predicated region
        $region37: #{tpu_custom_call.1} parent=35 // pred_check
          %p240 = pneg %p55
        $region38: #{tpu_custom_call.1} parent=35 // pred_check_branch
          %242 = sbr.rel (%p240) target = $region40
        $region39: #{tpu_custom_call.1} parent=35 // pred_region
          %243 = dma.done %s236, 2048
        $region40: #{tpu_custom_call.1} parent=35 // pred_fallthru
          _
        // Predicated region
        $region41: #{tpu_custom_call.1} parent=35 // pred_check
          %p244 = pneg %p81
        $region42: #{tpu_custom_call.1} parent=35 // pred_check_branch
          %246 = sbr.rel (%p244) target = $region44
        $region43: #{tpu_custom_call.1} parent=35 // pred_region
          %247 = dma.done [#allocation6], 1024
        $region44: #{tpu_custom_call.1} parent=35 // pred_fallthru
          _
        %s248 = sand.u32 %s42, 1
        %s249 = scalar_lea.sflag [#allocation3], %s248
        %s250 = sand.u32 %s42, 1
        %s251 = smul.addr %s250, 128
        %s252 = scalar_lea.vmem [#allocation2], %s251
        %p253 = pneg %p55
        %p254 = pneg %p52
        %p255 = pneg %p81
        %p256 = pneg %p78
        %p257 = scmp.lt.s32.totalorder %s27, 0
        %s258 = scalar_select %p257, %s27, 0
        %s259 = scalar_lea.vmem %s2, %s258
        %p260 = pneg %p107
        %p261 = pneg %p104
        %p262 = scmp.lt.s32.totalorder %s27, 0
        %s263 = scalar_select %p262, %s27, 0
        %s264 = scalar_lea.vmem %s3, %s263
        %p265 = pneg %p133
        %p266 = pneg %p130
        %p267 = pneg %p161
        %p268 = pneg %p158
        %s269 = sand.u32 %s148, 1
        %s270 = scalar_lea.sflag [#allocation4], %s269
        %s271 = sand.u32 %s148, 1
        %s272 = smul.addr %s271, 128
        %s273 = scalar_lea.vmem [#allocation7], %s272
        %s274 = smul.u32 32, %s26
        %p275 = scmp.lt.s32.totalorder %s27, 0
        %s276 = scalar_select %p275, %s27, 0
        %s277 = scalar_lea.vmem %s2, %s276
        %p278 = scmp.lt.s32.totalorder %s27, 0
        %s279 = scalar_select %p278, %s27, 0
        %s280 = scalar_lea.vmem %s3, %s279
        %s281 = smul.u32 32, %s26
        %v283 = vld [vmem:[%s239] sm:$0xf]
        %v284 = vld [vmem:[%s239 + $0x4] sm:$0xf]
        %v285 = vld [vmem:[%s239 + $0x8] sm:$0xf]
        %v286 = vld [vmem:[%s239 + $0xc] sm:$0xf]
        %v287 = vld [vmem:[%s239 + $0x10] sm:$0xf]
        %v288 = vld [vmem:[%s239 + $0x14] sm:$0xf]
        %v289 = vld [vmem:[%s239 + $0x18] sm:$0xf]
        %v290 = vld [vmem:[%s239 + $0x1c] sm:$0xf]
        %v291 = vld [vmem:[%s239 + $0x20] sm:$0xf]
        %v292 = vld [vmem:[%s239 + $0x24] sm:$0xf]
        %v293 = vld [vmem:[%s239 + $0x28] sm:$0xf]
        %v294 = vld [vmem:[%s239 + $0x2c] sm:$0xf]
        %v295 = vld [vmem:[%s239 + $0x30] sm:$0xf]
        %v296 = vld [vmem:[%s239 + $0x34] sm:$0xf]
        %v297 = vld [vmem:[%s239 + $0x38] sm:$0xf]
        %v298 = vld [vmem:[%s239 + $0x3c] sm:$0xf]
        %v299 = vld [vmem:[%s239 + $0x40] sm:$0xf]
        %v300 = vld [vmem:[%s239 + $0x44] sm:$0xf]
        %v301 = vld [vmem:[%s239 + $0x48] sm:$0xf]
        %v302 = vld [vmem:[%s239 + $0x4c] sm:$0xf]
        %v303 = vld [vmem:[%s239 + $0x50] sm:$0xf]
        %v304 = vld [vmem:[%s239 + $0x54] sm:$0xf]
        %v305 = vld [vmem:[%s239 + $0x58] sm:$0xf]
        %v306 = vld [vmem:[%s239 + $0x5c] sm:$0xf]
        %v307 = vld [vmem:[%s239 + $0x60] sm:$0xf]
        %v308 = vld [vmem:[%s239 + $0x64] sm:$0xf]
        %v309 = vld [vmem:[%s239 + $0x68] sm:$0xf]
        %v310 = vld [vmem:[%s239 + $0x6c] sm:$0xf]
        %v311 = vld [vmem:[%s239 + $0x70] sm:$0xf]
        %v312 = vld [vmem:[%s239 + $0x74] sm:$0xf]
        %v313 = vld [vmem:[%s239 + $0x78] sm:$0xf]
        %v314 = vld [vmem:[%s239 + $0x7c] sm:$0xf]
        %v315 = vld [vmem:[#allocation5] sm:$0xf]
        %v316 = vld [vmem:[#allocation5 + $0x4] sm:$0xf]
        %v317 = vld [vmem:[#allocation5 + $0x8] sm:$0xf]
        %v318 = vld [vmem:[#allocation5 + $0xc] sm:$0xf]
        %v319 = vld [vmem:[#allocation5 + $0x10] sm:$0xf]
        %v320 = vld [vmem:[#allocation5 + $0x14] sm:$0xf]
        %v321 = vld [vmem:[#allocation5 + $0x18] sm:$0xf]
        %v322 = vld [vmem:[#allocation5 + $0x1c] sm:$0xf]
        %v323 = vld [vmem:[#allocation5 + $0x20] sm:$0xf]
        %v324 = vld [vmem:[#allocation5 + $0x24] sm:$0xf]
        %v325 = vld [vmem:[#allocation5 + $0x28] sm:$0xf]
        %v326 = vld [vmem:[#allocation5 + $0x2c] sm:$0xf]
        %v327 = vld [vmem:[#allocation5 + $0x30] sm:$0xf]
        %v328 = vld [vmem:[#allocation5 + $0x34] sm:$0xf]
        %v329 = vld [vmem:[#allocation5 + $0x38] sm:$0xf]
        %v330 = vld [vmem:[#allocation5 + $0x3c] sm:$0xf]
        %v331 = vld [vmem:[%s277] sm:$0x1]
        %v333 = vlaneseq
        %v334 = vshrl.u32 %v333, 7
        %v335 = vsub.s32 0, %v334
        %v336 = vrot.slane %v331, %v335
        %v370 = vunpack.c.l.b16 %v283
        %v371 = vunpack.c.l.b16 %v284
        %v372 = vunpack.c.l.b16 %v285
        %v373 = vunpack.c.l.b16 %v286
        %v374 = vunpack.c.l.b16 %v287
        %v375 = vunpack.c.l.b16 %v288
        %v376 = vunpack.c.l.b16 %v289
        %v377 = vunpack.c.l.b16 %v290
        %v378 = vunpack.c.l.b16 %v291
        %v379 = vunpack.c.l.b16 %v292
        %v380 = vunpack.c.l.b16 %v293
        %v381 = vunpack.c.l.b16 %v294
        %v382 = vunpack.c.l.b16 %v295
        %v383 = vunpack.c.l.b16 %v296
        %v384 = vunpack.c.l.b16 %v297
        %v385 = vunpack.c.l.b16 %v298
        %v386 = vunpack.c.l.b16 %v299
        %v387 = vunpack.c.l.b16 %v300
        %v388 = vunpack.c.l.b16 %v301
        %v389 = vunpack.c.l.b16 %v302
        %v390 = vunpack.c.l.b16 %v303
        %v391 = vunpack.c.l.b16 %v304
        %v392 = vunpack.c.l.b16 %v305
        %v393 = vunpack.c.l.b16 %v306
        %v394 = vunpack.c.l.b16 %v307
        %v395 = vunpack.c.l.b16 %v308
        %v396 = vunpack.c.l.b16 %v309
        %v397 = vunpack.c.l.b16 %v310
        %v398 = vunpack.c.l.b16 %v311
        %v399 = vunpack.c.l.b16 %v312
        %v400 = vunpack.c.l.b16 %v313
        %v401 = vunpack.c.l.b16 %v314
        %v402 = vpack.c.b16 %v371, %v370
        %v403 = vpack.c.b16 %v373, %v372
        %v404 = vpack.c.b16 %v375, %v374
        %v405 = vpack.c.b16 %v377, %v376
        %v406 = vpack.c.b16 %v379, %v378
        %v407 = vpack.c.b16 %v381, %v380
        %v408 = vpack.c.b16 %v383, %v382
        %v409 = vpack.c.b16 %v385, %v384
        %v410 = vpack.c.b16 %v387, %v386
        %v411 = vpack.c.b16 %v389, %v388
        %v412 = vpack.c.b16 %v391, %v390
        %v413 = vpack.c.b16 %v393, %v392
        %v414 = vpack.c.b16 %v395, %v394
        %v415 = vpack.c.b16 %v397, %v396
        %v416 = vpack.c.b16 %v399, %v398
        %v417 = vpack.c.b16 %v401, %v400
        %v450 = vunpack.c.l.b16 %v315
        %v451 = vunpack.c.l.b16 %v316
        %v452 = vunpack.c.l.b16 %v317
        %v453 = vunpack.c.l.b16 %v318
        %v454 = vunpack.c.l.b16 %v319
        %v455 = vunpack.c.l.b16 %v320
        %v456 = vunpack.c.l.b16 %v321
        %v457 = vunpack.c.l.b16 %v322
        %v458 = vunpack.c.l.b16 %v323
        %v459 = vunpack.c.l.b16 %v324
        %v460 = vunpack.c.l.b16 %v325
        %v461 = vunpack.c.l.b16 %v326
        %v462 = vunpack.c.l.b16 %v327
        %v463 = vunpack.c.l.b16 %v328
        %v464 = vunpack.c.l.b16 %v329
        %v465 = vunpack.c.l.b16 %v330
        %v466 = vpack.c.b16 %v451, %v450
        %v467 = vpack.c.b16 %v453, %v452
        %v468 = vpack.c.b16 %v455, %v454
        %v469 = vpack.c.b16 %v457, %v456
        %v470 = vpack.c.b16 %v459, %v458
        %v471 = vpack.c.b16 %v461, %v460
        %v472 = vpack.c.b16 %v463, %v462
        %v473 = vpack.c.b16 %v465, %v464
        %482 = vmatprep.subr.bf16.mxu0 0
        %483 = vmatpush1.bf16.msra.mxu0 %v473
        %484 = vmatprep.subr.bf16.mxu0 0
        %485 = vmatpush1.bf16.msra.mxu0 %v472
        %486 = vmatprep.subr.bf16.mxu0 0
        %487 = vmatpush1.bf16.msra.mxu0 %v471
        %488 = vmatprep.subr.bf16.mxu0 0
        %489 = vmatpush1.bf16.msra.mxu0 %v470
        %490 = vmatprep.subr.bf16.mxu0 0
        %491 = vmatpush1.bf16.msra.mxu0 %v469
        %492 = vmatprep.subr.bf16.mxu0 0
        %493 = vmatpush1.bf16.msra.mxu0 %v468
        %494 = vmatprep.subr.bf16.mxu0 0
        %495 = vmatpush1.bf16.msra.mxu0 %v467
        %496 = vmatprep.subr.bf16.mxu0 0
        %497 = vmatpush1.bf16.msra.mxu0 %v466
        %498 = vmatprep.subr.bf16.mxu0 0
        %499 = vmatpush2.bf16.msra.mxu0 0
        %500 = vmatprep.subr.bf16.mxu0 0
        %501 = vmatpush2.bf16.msra.mxu0 0
        %502 = vmatprep.subr.bf16.mxu0 0
        %503 = vmatpush2.bf16.msra.mxu0 0
        %504 = vmatprep.subr.bf16.mxu0 0
        %505 = vmatpush2.bf16.msra.mxu0 0
        %506 = vmatprep.subr.bf16.mxu0 0
        %507 = vmatpush2.bf16.msra.mxu0 0
        %508 = vmatprep.subr.bf16.mxu0 0
        %509 = vmatpush2.bf16.msra.mxu0 0
        %510 = vmatprep.subr.bf16.mxu0 0
        %511 = vmatpush2.bf16.msra.mxu0 0
        %512 = vmatprep.subr.bf16.mxu0 0
        %513 = vmatpush2.bf16.msra.mxu0 0
        %514 = vmatprep.mubr.bf16.mxu0 0
        %515 = vmatmul.mubr.bf16.gmra.mxu0 %v402
        %v516 = vpop.f32.mrf.mxu0
        %v517 = vadd.f32 %v336, %v516
        %v518 = vpop.f32.mrf.mxu0
        %v519 = vpop.f32.mrf.mxu0
        %v520 = vadd.f32 %v336, %v519
        %v521 = vpop.f32.mrf.mxu0
        %522 = vmatprep.mubr.bf16.mxu0 0
        %523 = vmatmul.mubr.bf16.gmra.mxu0 %v403
        %v524 = vpop.f32.mrf.mxu0
        %v525 = vadd.f32 %v336, %v524
        %v526 = vpop.f32.mrf.mxu0
        %v527 = vpop.f32.mrf.mxu0
        %v528 = vadd.f32 %v336, %v527
        %v529 = vpop.f32.mrf.mxu0
        %530 = vmatprep.mubr.bf16.mxu0 0
        %531 = vmatmul.mubr.bf16.gmra.mxu0 %v404
        %v532 = vpop.f32.mrf.mxu0
        %v533 = vadd.f32 %v336, %v532
        %v534 = vpop.f32.mrf.mxu0
        %v535 = vpop.f32.mrf.mxu0
        %v536 = vadd.f32 %v336, %v535
        %v537 = vpop.f32.mrf.mxu0
        %538 = vmatprep.mubr.bf16.mxu0 0
        %539 = vmatmul.mubr.bf16.gmra.mxu0 %v405
        %v540 = vpop.f32.mrf.mxu0
        %v541 = vadd.f32 %v336, %v540
        %v542 = vpop.f32.mrf.mxu0
        %v543 = vpop.f32.mrf.mxu0
        %v544 = vadd.f32 %v336, %v543
        %v545 = vpop.f32.mrf.mxu0
        %546 = vmatprep.mubr.bf16.mxu0 0
        %547 = vmatmul.mubr.bf16.gmra.mxu0 %v406
        %v548 = vpop.f32.mrf.mxu0
        %v549 = vadd.f32 %v336, %v548
        %v550 = vpop.f32.mrf.mxu0
        %v551 = vpop.f32.mrf.mxu0
        %v552 = vadd.f32 %v336, %v551
        %v553 = vpop.f32.mrf.mxu0
        %554 = vmatprep.mubr.bf16.mxu0 0
        %555 = vmatmul.mubr.bf16.gmra.mxu0 %v407
        %v556 = vpop.f32.mrf.mxu0
        %v557 = vadd.f32 %v336, %v556
        %v558 = vpop.f32.mrf.mxu0
        %v559 = vpop.f32.mrf.mxu0
        %v560 = vadd.f32 %v336, %v559
        %v561 = vpop.f32.mrf.mxu0
        %562 = vmatprep.mubr.bf16.mxu0 0
        %563 = vmatmul.mubr.bf16.gmra.mxu0 %v408
        %v564 = vpop.f32.mrf.mxu0
        %v565 = vadd.f32 %v336, %v564
        %v566 = vpop.f32.mrf.mxu0
        %v567 = vpop.f32.mrf.mxu0
        %v568 = vadd.f32 %v336, %v567
        %v569 = vpop.f32.mrf.mxu0
        %570 = vmatprep.mubr.bf16.mxu0 0
        %571 = vmatmul.mubr.bf16.gmra.mxu0 %v409
        %v572 = vpop.f32.mrf.mxu0
        %v573 = vadd.f32 %v336, %v572
        %v574 = vpop.f32.mrf.mxu0
        %v575 = vpop.f32.mrf.mxu0
        %v576 = vadd.f32 %v336, %v575
        %v577 = vpop.f32.mrf.mxu0
        %578 = vmatprep.mubr.bf16.mxu0 0
        %579 = vmatmul.mubr.bf16.gmra.mxu0 %v410
        %v580 = vpop.f32.mrf.mxu0
        %v581 = vadd.f32 %v336, %v580
        %v582 = vpop.f32.mrf.mxu0
        %v583 = vpop.f32.mrf.mxu0
        %v584 = vadd.f32 %v336, %v583
        %v585 = vpop.f32.mrf.mxu0
        %586 = vmatprep.mubr.bf16.mxu0 0
        %587 = vmatmul.mubr.bf16.gmra.mxu0 %v411
        %v588 = vpop.f32.mrf.mxu0
        %v589 = vadd.f32 %v336, %v588
        %v590 = vpop.f32.mrf.mxu0
        %v591 = vpop.f32.mrf.mxu0
        %v592 = vadd.f32 %v336, %v591
        %v593 = vpop.f32.mrf.mxu0
        %594 = vmatprep.mubr.bf16.mxu0 0
        %595 = vmatmul.mubr.bf16.gmra.mxu0 %v412
        %v596 = vpop.f32.mrf.mxu0
        %v597 = vadd.f32 %v336, %v596
        %v598 = vpop.f32.mrf.mxu0
        %v599 = vpop.f32.mrf.mxu0
        %v600 = vadd.f32 %v336, %v599
        %v601 = vpop.f32.mrf.mxu0
        %602 = vmatprep.mubr.bf16.mxu0 0
        %603 = vmatmul.mubr.bf16.gmra.mxu0 %v413
        %v604 = vpop.f32.mrf.mxu0
        %v605 = vadd.f32 %v336, %v604
        %v606 = vpop.f32.mrf.mxu0
        %v607 = vpop.f32.mrf.mxu0
        %v608 = vadd.f32 %v336, %v607
        %v609 = vpop.f32.mrf.mxu0
        %610 = vmatprep.mubr.bf16.mxu0 0
        %611 = vmatmul.mubr.bf16.gmra.mxu0 %v414
        %v612 = vpop.f32.mrf.mxu0
        %v613 = vadd.f32 %v336, %v612
        %v614 = vpop.f32.mrf.mxu0
        %v615 = vpop.f32.mrf.mxu0
        %v616 = vadd.f32 %v336, %v615
        %v617 = vpop.f32.mrf.mxu0
        %618 = vmatprep.mubr.bf16.mxu0 0
        %619 = vmatmul.mubr.bf16.gmra.mxu0 %v415
        %v620 = vpop.f32.mrf.mxu0
        %v621 = vadd.f32 %v336, %v620
        %v622 = vpop.f32.mrf.mxu0
        %v623 = vpop.f32.mrf.mxu0
        %v624 = vadd.f32 %v336, %v623
        %v625 = vpop.f32.mrf.mxu0
        %626 = vmatprep.mubr.bf16.mxu0 0
        %627 = vmatmul.mubr.bf16.gmra.mxu0 %v416
        %v628 = vpop.f32.mrf.mxu0
        %v629 = vadd.f32 %v336, %v628
        %v630 = vpop.f32.mrf.mxu0
        %v631 = vpop.f32.mrf.mxu0
        %v632 = vadd.f32 %v336, %v631
        %v633 = vpop.f32.mrf.mxu0
        %634 = vmatprep.mubr.bf16.mxu0 0
        %635 = vmatmul.mubr.bf16.gmra.mxu0 %v417
        %v636 = vpop.f32.mrf.mxu0
        %v637 = vadd.f32 %v336, %v636
        %v638 = vpop.f32.mrf.mxu0
        %v639 = vpop.f32.mrf.mxu0
        %v640 = vadd.f32 %v336, %v639
        %v641 = vpop.f32.mrf.mxu0
        %642 = vdwg.mxu0
        %v643 = vld [vmem:[%s280] sm:$0x1]
        %v645 = vlaneseq
        %v646 = vshrl.u32 %v645, 7
        %v647 = vsub.s32 0, %v646
        %v648 = vrot.slane %v643, %v647
        %v650 = vmul.f32 %v517, %v648
        %v651 = vmul.f32 %v520, %v648
        %v652 = vmul.f32 %v525, %v648
        %v653 = vmul.f32 %v528, %v648
        %v654 = vmul.f32 %v533, %v648
        %v655 = vmul.f32 %v536, %v648
        %v656 = vmul.f32 %v541, %v648
        %v657 = vmul.f32 %v544, %v648
        %v658 = vmul.f32 %v549, %v648
        %v659 = vmul.f32 %v552, %v648
        %v660 = vmul.f32 %v557, %v648
        %v661 = vmul.f32 %v560, %v648
        %v662 = vmul.f32 %v565, %v648
        %v663 = vmul.f32 %v568, %v648
        %v664 = vmul.f32 %v573, %v648
        %v665 = vmul.f32 %v576, %v648
        %v666 = vmul.f32 %v581, %v648
        %v667 = vmul.f32 %v584, %v648
        %v668 = vmul.f32 %v589, %v648
        %v669 = vmul.f32 %v592, %v648
        %v670 = vmul.f32 %v597, %v648
        %v671 = vmul.f32 %v600, %v648
        %v672 = vmul.f32 %v605, %v648
        %v673 = vmul.f32 %v608, %v648
        %v674 = vmul.f32 %v613, %v648
        %v675 = vmul.f32 %v616, %v648
        %v676 = vmul.f32 %v621, %v648
        %v677 = vmul.f32 %v624, %v648
        %v678 = vmul.f32 %v629, %v648
        %v679 = vmul.f32 %v632, %v648
        %v680 = vmul.f32 %v637, %v648
        %v681 = vmul.f32 %v640, %v648
        %v682 = vmax.f32 %v517, %v650
        %v683 = vmax.f32 %v520, %v651
        %v684 = vmax.f32 %v525, %v652
        %v685 = vmax.f32 %v528, %v653
        %v686 = vmax.f32 %v533, %v654
        %v687 = vmax.f32 %v536, %v655
        %v688 = vmax.f32 %v541, %v656
        %v689 = vmax.f32 %v544, %v657
        %v690 = vmax.f32 %v549, %v658
        %v691 = vmax.f32 %v552, %v659
        %v692 = vmax.f32 %v557, %v660
        %v693 = vmax.f32 %v560, %v661
        %v694 = vmax.f32 %v565, %v662
        %v695 = vmax.f32 %v568, %v663
        %v696 = vmax.f32 %v573, %v664
        %v697 = vmax.f32 %v576, %v665
        %v698 = vmax.f32 %v581, %v666
        %v699 = vmax.f32 %v584, %v667
        %v700 = vmax.f32 %v589, %v668
        %v701 = vmax.f32 %v592, %v669
        %v702 = vmax.f32 %v597, %v670
        %v703 = vmax.f32 %v600, %v671
        %v704 = vmax.f32 %v605, %v672
        %v705 = vmax.f32 %v608, %v673
        %v706 = vmax.f32 %v613, %v674
        %v707 = vmax.f32 %v616, %v675
        %v708 = vmax.f32 %v621, %v676
        %v709 = vmax.f32 %v624, %v677
        %v710 = vmax.f32 %v629, %v678
        %v711 = vmax.f32 %v632, %v679
        %v712 = vmax.f32 %v637, %v680
        %v713 = vmax.f32 %v640, %v681
        %v714 = vpack.c.bf16 %v683, %v682
        %v715 = vpack.c.bf16 %v685, %v684
        %v716 = vpack.c.bf16 %v687, %v686
        %v717 = vpack.c.bf16 %v689, %v688
        %v718 = vpack.c.bf16 %v691, %v690
        %v719 = vpack.c.bf16 %v693, %v692
        %v720 = vpack.c.bf16 %v695, %v694
        %v721 = vpack.c.bf16 %v697, %v696
        %v722 = vpack.c.bf16 %v699, %v698
        %v723 = vpack.c.bf16 %v701, %v700
        %v724 = vpack.c.bf16 %v703, %v702
        %v725 = vpack.c.bf16 %v705, %v704
        %v726 = vpack.c.bf16 %v707, %v706
        %v727 = vpack.c.bf16 %v709, %v708
        %v728 = vpack.c.bf16 %v711, %v710
        %v729 = vpack.c.bf16 %v713, %v712
        %v746 = vunpack.c.l.b16 %v714
        %v747 = vunpack.c.h.b16 %v714
        %v748 = vunpack.c.l.b16 %v715
        %v749 = vunpack.c.h.b16 %v715
        %v750 = vunpack.c.l.b16 %v716
        %v751 = vunpack.c.h.b16 %v716
        %v752 = vunpack.c.l.b16 %v717
        %v753 = vunpack.c.h.b16 %v717
        %v754 = vunpack.c.l.b16 %v718
        %v755 = vunpack.c.h.b16 %v718
        %v756 = vunpack.c.l.b16 %v719
        %v757 = vunpack.c.h.b16 %v719
        %v758 = vunpack.c.l.b16 %v720
        %v759 = vunpack.c.h.b16 %v720
        %v760 = vunpack.c.l.b16 %v721
        %v761 = vunpack.c.h.b16 %v721
        %v762 = vunpack.c.l.b16 %v722
        %v763 = vunpack.c.h.b16 %v722
        %v764 = vunpack.c.l.b16 %v723
        %v765 = vunpack.c.h.b16 %v723
        %v766 = vunpack.c.l.b16 %v724
        %v767 = vunpack.c.h.b16 %v724
        %v768 = vunpack.c.l.b16 %v725
        %v769 = vunpack.c.h.b16 %v725
        %v770 = vunpack.c.l.b16 %v726
        %v771 = vunpack.c.h.b16 %v726
        %v772 = vunpack.c.l.b16 %v727
        %v773 = vunpack.c.h.b16 %v727
        %v774 = vunpack.c.l.b16 %v728
        %v775 = vunpack.c.h.b16 %v728
        %v776 = vunpack.c.l.b16 %v729
        %v777 = vunpack.c.h.b16 %v729
        %v778 = vpack.c.b16 %v746, %v746
        %v779 = vpack.c.b16 %v747, %v747
        %v780 = vpack.c.b16 %v748, %v748
        %v781 = vpack.c.b16 %v749, %v749
        %v782 = vpack.c.b16 %v750, %v750
        %v783 = vpack.c.b16 %v751, %v751
        %v784 = vpack.c.b16 %v752, %v752
        %v785 = vpack.c.b16 %v753, %v753
        %v786 = vpack.c.b16 %v754, %v754
        %v787 = vpack.c.b16 %v755, %v755
        %v788 = vpack.c.b16 %v756, %v756
        %v789 = vpack.c.b16 %v757, %v757
        %v790 = vpack.c.b16 %v758, %v758
        %v791 = vpack.c.b16 %v759, %v759
        %v792 = vpack.c.b16 %v760, %v760
        %v793 = vpack.c.b16 %v761, %v761
        %v794 = vpack.c.b16 %v762, %v762
        %v795 = vpack.c.b16 %v763, %v763
        %v796 = vpack.c.b16 %v764, %v764
        %v797 = vpack.c.b16 %v765, %v765
        %v798 = vpack.c.b16 %v766, %v766
        %v799 = vpack.c.b16 %v767, %v767
        %v800 = vpack.c.b16 %v768, %v768
        %v801 = vpack.c.b16 %v769, %v769
        %v802 = vpack.c.b16 %v770, %v770
        %v803 = vpack.c.b16 %v771, %v771
        %v804 = vpack.c.b16 %v772, %v772
        %v805 = vpack.c.b16 %v773, %v773
        %v806 = vpack.c.b16 %v774, %v774
        %v807 = vpack.c.b16 %v775, %v775
        %v808 = vpack.c.b16 %v776, %v776
        %v809 = vpack.c.b16 %v777, %v777
        %842 = vst [vmem:[%s273] sm:$0xf] %v778
        %843 = vst [vmem:[%s273 + $0x4] sm:$0xf] %v779
        %844 = vst [vmem:[%s273 + $0x8] sm:$0xf] %v780
        %845 = vst [vmem:[%s273 + $0xc] sm:$0xf] %v781
        %846 = vst [vmem:[%s273 + $0x10] sm:$0xf] %v782
        %847 = vst [vmem:[%s273 + $0x14] sm:$0xf] %v783
        %848 = vst [vmem:[%s273 + $0x18] sm:$0xf] %v784
        %849 = vst [vmem:[%s273 + $0x1c] sm:$0xf] %v785
        %850 = vst [vmem:[%s273 + $0x20] sm:$0xf] %v786
        %851 = vst [vmem:[%s273 + $0x24] sm:$0xf] %v787
        %852 = vst [vmem:[%s273 + $0x28] sm:$0xf] %v788
        %853 = vst [vmem:[%s273 + $0x2c] sm:$0xf] %v789
        %854 = vst [vmem:[%s273 + $0x30] sm:$0xf] %v790
        %855 = vst [vmem:[%s273 + $0x34] sm:$0xf] %v791
        %856 = vst [vmem:[%s273 + $0x38] sm:$0xf] %v792
        %857 = vst [vmem:[%s273 + $0x3c] sm:$0xf] %v793
        %858 = vst [vmem:[%s273 + $0x40] sm:$0xf] %v794
        %859 = vst [vmem:[%s273 + $0x44] sm:$0xf] %v795
        %860 = vst [vmem:[%s273 + $0x48] sm:$0xf] %v796
        %861 = vst [vmem:[%s273 + $0x4c] sm:$0xf] %v797
        %862 = vst [vmem:[%s273 + $0x50] sm:$0xf] %v798
        %863 = vst [vmem:[%s273 + $0x54] sm:$0xf] %v799
        %864 = vst [vmem:[%s273 + $0x58] sm:$0xf] %v800
        %865 = vst [vmem:[%s273 + $0x5c] sm:$0xf] %v801
        %866 = vst [vmem:[%s273 + $0x60] sm:$0xf] %v802
        %867 = vst [vmem:[%s273 + $0x64] sm:$0xf] %v803
        %868 = vst [vmem:[%s273 + $0x68] sm:$0xf] %v804
        %869 = vst [vmem:[%s273 + $0x6c] sm:$0xf] %v805
        %870 = vst [vmem:[%s273 + $0x70] sm:$0xf] %v806
        %871 = vst [vmem:[%s273 + $0x74] sm:$0xf] %v807
        %872 = vst [vmem:[%s273 + $0x78] sm:$0xf] %v808
        %873 = vst [vmem:[%s273 + $0x7c] sm:$0xf] %v809
        %s874 = sand.u32 %s148, 1
        %s875 = scalar_lea.sflag [#allocation4], %s874
        %s876 = sand.u32 %s148, 1
        %s877 = smul.addr %s876, 128
        %s878 = scalar_lea.vmem [#allocation7], %s877
        // Predicated region
        $region45: #{tpu_custom_call.1} parent=35 // pred_check
          %p879 = pneg %p158
        $region46: #{tpu_custom_call.1} parent=35 // pred_check_branch
          %881 = sbr.rel (%p879) target = $region48
        $region47: #{tpu_custom_call.1} parent=35 // pred_region
          %s882 = smul.u32 32, %s26
          %s884 = ssub.s32 2048, 2048
          %885 = vsyncadd %s875, %s884
          %s886 = sadd.s32 %s27, %s882
          %s887 = smul.addr %s886, 64
          %s888 = scalar_lea.hbm %s4, %s887
          %s889 = sshll.u32 %s878, 4
          %s890 = int_to_ptr.vmem [resolvable:$true] %s889
          %895 = dma.vmem_to_hbm [thread:$0]  %s890, 2048, %s888, %s875, 64, 64, 4
        $region48: #{tpu_custom_call.1} parent=35 // pred_fallthru
          _
      $region36: #{tpu_custom_call.1} parent=5 // pred_fallthru
        _
      %p896 = scmp.le.s32.totalorder 2, %s17
      // Predicated region
      $region49: #{tpu_custom_call.1} parent=5 // pred_check
        %p897 = pneg %p896
      $region50: #{tpu_custom_call.1} parent=5 // pred_check_branch
        %899 = sbr.rel (%p897) target = $region52
      $region51: #{tpu_custom_call.1} parent=5 // pred_region
        %s900 = ssub.s32 %s17, 2
        // Predicated region
        $region53: #{tpu_custom_call.1} parent=51 // pred_check
          %p901 = pneg %p164
        $region54: #{tpu_custom_call.1} parent=51 // pred_check_branch
          %903 = sbr.rel (%p901) target = $region56
        $region55: #{tpu_custom_call.1} parent=51 // pred_region
          %s904 = sand.u32 %s149, 1
          %s905 = scalar_lea.sflag [#allocation4], %s904
          %s906 = sand.u32 %s149, 1
          %s907 = smul.addr %s906, 128
          %s908 = scalar_lea.vmem [#allocation7], %s907
          %909 = dma.done %s905, 2048
        $region56: #{tpu_custom_call.1} parent=51 // pred_fallthru
          _
      $region52: #{tpu_custom_call.1} parent=5 // pred_fallthru
        _
    $region6: #{tpu_custom_call.1} parent=1 // loop_footer
      %s21 = sadd.s32 1, %s17
    $region7: #{tpu_custom_call.1} parent=1 // loop_footer_branch
      %16 = sbr.rel target = $region3
    $region8: #{tpu_custom_call.1} parent=1 // loop_exit
      _
    %910 = vsyncpa [#allocation3], 1
    %s911 = scalar_lea.sflag [#allocation3], 1
    %912 = vsyncpa %s911, 1
    %913 = vsyncpa [#allocation6], 1
    %914 = vsyncpa [#allocation4], 1
    %s915 = scalar_lea.sflag [#allocation4], 1
    %916 = vsyncpa %s915, 1

</llo_original>
